<compile_context>
chip_gen: v6e
topology: v6e:2x2x1
jax: 0.10.0
libtpu: 0.0.40
codegen_flags: <defaults>
</compile_context>

<pallas_src>
import functools

import jax
import jax.numpy as jnp
from jax import lax
from jax.experimental import pallas as pl
from jax.experimental.pallas import tpu as pltpu


def _round_up(v, m):
    return -(-v // m) * m


def _tpu_vmem_and_cores():
    """Best-effort hardware query; conservative defaults if unavailable."""
    vmem_cap = 64 * 1024 * 1024   # smallest per-core VMEM across v5e/v6e/v7x
    cores = 2                     # assume megacore unless we know otherwise
    try:
        info = pltpu.get_tpu_info()
        vmem_cap = int(getattr(info, "vmem_capacity_bytes", vmem_cap))
    except Exception:
        pass
    try:
        kind = jax.devices()[0].device_kind.lower()
        # v5e / v6e expose a single TensorCore per chip.
        if ("v5" in kind) or ("v6" in kind):
            cores = 1
    except Exception:
        pass
    return vmem_cap, cores


# ----------------------------------------------------------------------------
# Fast path (stride == 1): in-kernel K*K tap accumulation, no im2col in HBM.
# ----------------------------------------------------------------------------
def _make_tap_kernel(K):
    """Kernel refs = (x_row_0 .. x_row_{K-1}, weights, bias, out_row)."""

    def kernel(*refs):
        x_rows = refs[:K]
        w_ref, b_ref, o_ref = refs[K], refs[K + 1], refs[K + 2]
        coutp, wopp = o_ref.shape
        acc = jnp.zeros((coutp, wopp), jnp.float32)        # lives in vregs
        for kh in range(K):
            xrow = x_rows[kh][...]                         # (CINP, XW) bf16
            for kw in range(K):
                rhs = xrow[:, kw:kw + wopp]                # static lane-offset slice
                acc = acc + jnp.dot(w_ref[kh * K + kw], rhs,
                                    preferred_element_type=jnp.float32)
        o_ref[...] = (acc + b_ref[...]).astype(o_ref.dtype)

    return kernel


def _forward_stride1(x, weight, bias, *, kernel_size, upsample):
    N, CIN, H, W = x.shape
    K, U = kernel_size, upsample
    COUT_FULL = weight.shape[0]
    C = COUT_FULL // (U * U)
    pad = K // 2

    # Reflection pad (XLA layout glue, one cheap pass over the input).
    x_pad = jnp.pad(x, ((0, 0), (0, 0), (pad, pad), (pad, pad)), mode="reflect")
    Hp, Wp = H + 2 * pad, W + 2 * pad
    HO, WO = Hp - K + 1, Wp - K + 1

    # Alignment padding: channels -> 16 (bf16 sublane packing), lanes -> 128.
    CINP = _round_up(CIN, 16)
    COUTP = _round_up(COUT_FULL, 16)
    WOPP = _round_up(WO, 128)
    # Input lane width must allow a WOPP-wide slice at offset K-1.
    XW = _round_up(max(Wp, WOPP + K - 1), 128)

    # (N, Hp, CINP, XW) bf16 — a single cheap relayout pass, NOT im2col.
    x_r = jnp.transpose(x_pad, (0, 2, 1, 3))
    x_r = jnp.pad(x_r, ((0, 0), (0, 0), (0, CINP - CIN), (0, XW - Wp)))
    x_r = x_r.astype(jnp.bfloat16)

    # Weights: (K*K taps, COUTP, CINP), tap index = kh*K + kw (matches kernel).
    w_r = jnp.transpose(weight, (2, 3, 0, 1)).reshape(K * K, COUT_FULL, CIN)
    w_r = jnp.pad(w_r, ((0, 0), (0, COUTP - COUT_FULL), (0, CINP - CIN)))
    w_r = w_r.astype(jnp.bfloat16)
    b_r = jnp.pad(bias, (0, COUTP - COUT_FULL)).reshape(COUTP, 1).astype(jnp.float32)

    def x_index_map(kh):
        # H block size is 1 -> block index == row index, so "+kh" is legal.
        return lambda n, ho, _kh=kh: (n, ho + _kh, 0, 0)

    in_specs = [pl.BlockSpec((None, None, CINP, XW), x_index_map(kh))
                for kh in range(K)]
    in_specs += [
        pl.BlockSpec((K * K, COUTP, CINP), lambda n, ho: (0, 0, 0)),  # resident
        pl.BlockSpec((COUTP, 1), lambda n, ho: (0, 0)),               # resident
    ]

    flops = 2 * N * HO * K * K * COUTP * CINP * WOPP
    bytes_accessed = (N * HO * K * CINP * XW * 2
                      + K * K * COUTP * CINP * 2 + COUTP * 4
                      + N * HO * COUTP * WOPP * 2)

    conv = pl.pallas_call(
        _make_tap_kernel(K),
        out_shape=jax.ShapeDtypeStruct((N, HO, COUTP, WOPP), jnp.bfloat16),
        grid=(N, HO),
        in_specs=in_specs,
        out_specs=pl.BlockSpec((None, None, COUTP, WOPP), lambda n, ho: (n, ho, 0, 0)),
        compiler_params=pltpu.CompilerParams(
            dimension_semantics=("parallel", "parallel")),
        cost_estimate=pl.CostEstimate(flops=flops, transcendentals=0,
                                      bytes_accessed=bytes_accessed),
    )(*([x_r] * K + [w_r, b_r]))

    # Drop alignment padding, then the fused PixelShuffle transpose:
    # out[n, c, ho*U+uh, wo*U+uw] = conv[n, ho, c*U*U + uh*U + uw, wo]
    conv = conv[:, :, :COUT_FULL, :WO].reshape(N, HO, C, U, U, WO)
    out = jnp.transpose(conv, (0, 2, 1, 3, 5, 4)).reshape(N, C, HO * U, WO * U)
    return out.astype(jnp.float32)


# ----------------------------------------------------------------------------
# General-stride fallback: weights-stationary im2col GEMM (validated path).
# ----------------------------------------------------------------------------
def _conv_mm_kernel(p_ref, w_ref, b_ref, o_ref):
    acc = jnp.dot(w_ref[...], p_ref[...], preferred_element_type=jnp.float32)
    o_ref[...] = (acc + b_ref[...]).astype(o_ref.dtype)


def _pick_lane_tile(total, kkc, cout_full, vmem_budget, num_cores):
    """VMEM-budget-driven lane tile (multiple of 128)."""
    LANE = 128
    total_p = _round_up(total, LANE)
    # per-lane-column bytes: dbl-buffered bf16 patches + dbl-buffered bf16 out
    # + an f32 accumulator's worth of headroom.
    per_lane = 2 * kkc * 2 + 2 * cout_full * 2 + cout_full * 4
    fixed = 2 * cout_full * kkc * 2 + 2 * cout_full * 4           # weights + bias
    avail = max(vmem_budget - fixed, per_lane * LANE)
    tl = (avail // per_lane) // LANE * LANE
    tl = max(LANE, min(total_p, tl))
    if num_cores > 1 and total_p >= 2 * num_cores * LANE:
        # >=2 grid steps per TensorCore so each core still pipelines.
        tl = min(tl, max(LANE, (total_p // (2 * num_cores)) // LANE * LANE))
    return tl


def _forward_im2col(x, weight, bias, *, kernel_size, stride, upsample):
    N, CIN, H, W = x.shape
    COUT_FULL = weight.shape[0]
    K, S, U = kernel_size, stride, upsample
    C = COUT_FULL // (U * U)
    KKC = K * K * CIN
    pad = K // 2

    x_pad = jnp.pad(x, ((0, 0), (0, 0), (pad, pad), (pad, pad)), mode="reflect")
    Hp, Wp = H + 2 * pad, W + 2 * pad
    HO = (Hp - K) // S + 1
    WO = (Wp - K) // S + 1

    taps = []
    for kh in range(K):
        for kw in range(K):
            taps.append(
                lax.slice(
                    x_pad,
                    (0, 0, kh, kw),
                    (N, CIN, kh + (HO - 1) * S + 1, kw + (WO - 1) * S + 1),
                    (1, 1, S, S),
                ))
    patches = jnp.stack(taps, axis=0)
    patches = jnp.transpose(patches, (0, 2, 1, 3, 4)).reshape(KKC, N * HO * WO)

    vmem_cap, cores = _tpu_vmem_and_cores()
    total = N * HO * WO
    TL = _pick_lane_tile(total, KKC, COUT_FULL, vmem_cap // 2, cores)
    num_tiles = -(-total // TL)
    total_p = num_tiles * TL
    if total_p != total:
        patches = jnp.pad(patches, ((0, 0), (0, total_p - total)))
    patches = patches.astype(jnp.bfloat16)

    w2d = jnp.transpose(weight, (0, 2, 3, 1)).reshape(COUT_FULL, KKC).astype(jnp.bfloat16)
    b2d = bias.reshape(COUT_FULL, 1).astype(jnp.float32)

    flops = 2 * COUT_FULL * KKC * total_p
    bytes_accessed = (KKC * total_p * 2 + COUT_FULL * KKC * 2 + COUT_FULL * 4
                      + COUT_FULL * total_p * 2)

    out_flat = pl.pallas_call(
        _conv_mm_kernel,
        out_shape=jax.ShapeDtypeStruct((COUT_FULL, total_p), jnp.bfloat16),
        grid=(num_tiles,),
        in_specs=[
            pl.BlockSpec((KKC, TL), lambda t: (0, t)),          # patch lane tile
            pl.BlockSpec((COUT_FULL, KKC), lambda t: (0, 0)),   # weights (resident)
            pl.BlockSpec((COUT_FULL, 1), lambda t: (0, 0)),     # bias (resident)
        ],
        out_specs=pl.BlockSpec((COUT_FULL, TL), lambda t: (0, t)),
        compiler_params=pltpu.CompilerParams(
            dimension_semantics=("parallel",),
            vmem_limit_bytes=int(vmem_cap * 3 // 4),
        ),
        cost_estimate=pl.CostEstimate(flops=flops, transcendentals=0,
                                      bytes_accessed=bytes_accessed),
    )(patches, w2d, b2d)

    conv = out_flat[:, :total].reshape(C, U, U, N, HO, WO)
    out = jnp.transpose(conv, (3, 0, 4, 1, 5, 2)).reshape(N, C, HO * U, WO * U)
    return out.astype(jnp.float32)


# ----------------------------------------------------------------------------
# Public forward
# ----------------------------------------------------------------------------
@functools.partial(jax.jit, static_argnames=("kernel_size", "stride", "upsample"))
def conv_ps_forward(x, weight, bias, *, kernel_size, stride, upsample):
    """Forward of ConvPSLayer.

    x:      (N, Cin, H, W)          f32 NCHW
    weight: (Cout*u^2, Cin, k, k)   torch Conv2d OIHW layout
    bias:   (Cout*u^2,)
    returns (N, Cout, H_out*u, W_out*u)  f32
    """
    U = upsample if upsample else 1
    if stride == 1:
        return _forward_stride1(x, weight, bias, kernel_size=kernel_size, upsample=U)
    # TODO(synk): the in-kernel tap path specializes stride==1 (column taps are
    # static lane offsets); general stride keeps the im2col GEMM Pallas path.
    return _forward_im2col(x, weight, bias, kernel_size=kernel_size,
                           stride=stride, upsample=U)


def _reference(x, weight, bias, *, kernel_size, stride, upsample):
    """Pure-JAX f32 reference (reflection pad + conv + pixel shuffle)."""
    pad = kernel_size // 2
    x_pad = jnp.pad(x, ((0, 0), (0, 0), (pad, pad), (pad, pad)), mode="reflect")
    conv = lax.conv_general_dilated(
        x_pad, weight, window_strides=(stride, stride), padding="VALID",
        dimension_numbers=("NCHW", "OIHW", "NCHW"),
    ) + bias[None, :, None, None]
    N, CF, HO, WO = conv.shape
    U = upsample
    C = CF // (U * U)
    ps = conv.reshape(N, C, U, U, HO, WO)
    ps = jnp.transpose(ps, (0, 1, 4, 2, 5, 3))
    return ps.reshape(N, C, HO * U, WO * U)


if __name__ == "__main__":
    # Small shapes: batch=2, in_channels=4, out_channels=4, k=3, upsample=2
    N, CIN, H, W = 2, 4, 16, 16
    OUT_CH, K, U = 4, 3, 2

    key = jax.random.PRNGKey(0)
    kx, kwt, kb = jax.random.split(key, 3)
    x = jax.random.normal(kx, (N, CIN, H, W), dtype=jnp.float32)
    weight = jax.random.normal(kwt, (OUT_CH * U * U, CIN, K, K), dtype=jnp.float32) * 0.1
    bias = jax.random.normal(kb, (OUT_CH * U * U,), dtype=jnp.float32) * 0.1

    # stride == 1: in-kernel tap-accumulation path (no im2col in HBM).
    out = conv_ps_forward(x, weight, bias, kernel_size=K, stride=1, upsample=U)
    out = jax.block_until_ready(out)
    ref = _reference(x, weight, bias, kernel_size=K, stride=1, upsample=U)
    assert out.shape == (N, OUT_CH, H * U, W * U), out.shape
    assert jnp.allclose(out, ref, atol=5e-2, rtol=5e-2), "stride-1 mismatch vs reference"

    # stride == 2: im2col GEMM fallback path.
    out2 = conv_ps_forward(x, weight, bias, kernel_size=K, stride=2, upsample=U)
    out2 = jax.block_until_ready(out2)
    ref2 = _reference(x, weight, bias, kernel_size=K, stride=2, upsample=U)
    assert out2.shape == ref2.shape, (out2.shape, ref2.shape)
    assert jnp.allclose(out2, ref2, atol=5e-2, rtol=5e-2), "stride-2 mismatch vs reference"

    print("KERNEL_OK")
</pallas_src>

<mosaic_0001>
module attributes {stable_mosaic.version = 11 : i64} {
  func.func @kernel(%arg0: i32, %arg1: i32, %arg2: memref<1x1x16x256xbf16, #tpu.memory_space<vmem>>, %arg3: memref<1x1x16x256xbf16, #tpu.memory_space<vmem>>, %arg4: memref<1x1x16x256xbf16, #tpu.memory_space<vmem>>, %arg5: memref<9x16x16xbf16, #tpu.memory_space<vmem>>, %arg6: memref<16x1xf32, #tpu.memory_space<vmem>>, %arg7: memref<1x1x16x128xbf16, #tpu.memory_space<vmem>>) attributes {dimension_semantics = [#tpu.dimension_semantics<parallel>, #tpu.dimension_semantics<parallel>], iteration_bounds = array<i64: 2, 16>, scalar_prefetch = 0 : i64, scratch_operands = 0 : i64, tpu.core_type = #tpu.core_type<tc>, window_params = [{transform_indices = @transform_0, window_bounds = array<i64: 1, 1, 16, 256>}, {transform_indices = @transform_1, window_bounds = array<i64: 1, 1, 16, 256>}, {transform_indices = @transform_2, window_bounds = array<i64: 1, 1, 16, 256>}, {pipeline_mode = #tpu.pipeline_mode<synchronous>, transform_indices = @transform_3, window_bounds = array<i64: 9, 16, 16>}, {pipeline_mode = #tpu.pipeline_mode<synchronous>, transform_indices = @transform_4, window_bounds = array<i64: 16, 1>}, {transform_indices = @transform_5, window_bounds = array<i64: 1, 1, 16, 128>}]} {
    %cst = arith.constant 0.000000e+00 : f32
    %0 = vector.broadcast %cst : f32 to vector<16x128xf32>
    %c0 = arith.constant 0 : index
    %c0_0 = arith.constant 0 : index
    %c0_1 = arith.constant 0 : index
    %c0_2 = arith.constant 0 : index
    %1 = vector.load %arg2[%c0, %c0_0, %c0_1, %c0_2] : memref<1x1x16x256xbf16, #tpu.memory_space<vmem>>, vector<1x1x16x256xbf16>
    %2 = vector.shape_cast %1 : vector<1x1x16x256xbf16> to vector<16x256xbf16>
    %3 = vector.extract_strided_slice %2 {offsets = [0, 0], sizes = [16, 128], strides = [1, 1]} : vector<16x256xbf16> to vector<16x128xbf16>
    %c0_3 = arith.constant 0 : index
    %c0_4 = arith.constant 0 : index
    %c0_5 = arith.constant 0 : index
    %4 = vector.load %arg5[%c0_3, %c0_4, %c0_5] : memref<9x16x16xbf16, #tpu.memory_space<vmem>>, vector<1x16x16xbf16>
    %5 = vector.shape_cast %4 : vector<1x16x16xbf16> to vector<16x16xbf16>
    %cst_6 = arith.constant dense<0.000000e+00> : vector<16x128xf32>
    %6 = tpu.matmul %5, %3, %cst_6 {dimension_numbers = #tpu.dot_dimension_numbers<[1], [0], [0], [1], [0, 0, 1, 1], [], []>} : vector<16x16xbf16>, vector<16x128xbf16>, vector<16x128xf32> -> vector<16x128xf32>
    %7 = arith.addf %0, %6 : vector<16x128xf32>
    %8 = vector.extract_strided_slice %2 {offsets = [0, 1], sizes = [16, 128], strides = [1, 1]} : vector<16x256xbf16> to vector<16x128xbf16>
    %c1 = arith.constant 1 : index
    %c0_7 = arith.constant 0 : index
    %c0_8 = arith.constant 0 : index
    %9 = vector.load %arg5[%c1, %c0_7, %c0_8] : memref<9x16x16xbf16, #tpu.memory_space<vmem>>, vector<1x16x16xbf16>
    %10 = vector.shape_cast %9 : vector<1x16x16xbf16> to vector<16x16xbf16>
    %cst_9 = arith.constant dense<0.000000e+00> : vector<16x128xf32>
    %11 = tpu.matmul %10, %8, %cst_9 {dimension_numbers = #tpu.dot_dimension_numbers<[1], [0], [0], [1], [0, 0, 1, 1], [], []>} : vector<16x16xbf16>, vector<16x128xbf16>, vector<16x128xf32> -> vector<16x128xf32>
    %12 = arith.addf %7, %11 : vector<16x128xf32>
    %13 = vector.extract_strided_slice %2 {offsets = [0, 2], sizes = [16, 128], strides = [1, 1]} : vector<16x256xbf16> to vector<16x128xbf16>
    %c2 = arith.constant 2 : index
    %c0_10 = arith.constant 0 : index
    %c0_11 = arith.constant 0 : index
    %14 = vector.load %arg5[%c2, %c0_10, %c0_11] : memref<9x16x16xbf16, #tpu.memory_space<vmem>>, vector<1x16x16xbf16>
    %15 = vector.shape_cast %14 : vector<1x16x16xbf16> to vector<16x16xbf16>
    %cst_12 = arith.constant dense<0.000000e+00> : vector<16x128xf32>
    %16 = tpu.matmul %15, %13, %cst_12 {dimension_numbers = #tpu.dot_dimension_numbers<[1], [0], [0], [1], [0, 0, 1, 1], [], []>} : vector<16x16xbf16>, vector<16x128xbf16>, vector<16x128xf32> -> vector<16x128xf32>
    %17 = arith.addf %12, %16 : vector<16x128xf32>
    %c0_13 = arith.constant 0 : index
    %c0_14 = arith.constant 0 : index
    %c0_15 = arith.constant 0 : index
    %c0_16 = arith.constant 0 : index
    %18 = vector.load %arg3[%c0_13, %c0_14, %c0_15, %c0_16] : memref<1x1x16x256xbf16, #tpu.memory_space<vmem>>, vector<1x1x16x256xbf16>
    %19 = vector.shape_cast %18 : vector<1x1x16x256xbf16> to vector<16x256xbf16>
    %20 = vector.extract_strided_slice %19 {offsets = [0, 0], sizes = [16, 128], strides = [1, 1]} : vector<16x256xbf16> to vector<16x128xbf16>
    %c3 = arith.constant 3 : index
    %c0_17 = arith.constant 0 : index
    %c0_18 = arith.constant 0 : index
    %21 = vector.load %arg5[%c3, %c0_17, %c0_18] : memref<9x16x16xbf16, #tpu.memory_space<vmem>>, vector<1x16x16xbf16>
    %22 = vector.shape_cast %21 : vector<1x16x16xbf16> to vector<16x16xbf16>
    %cst_19 = arith.constant dense<0.000000e+00> : vector<16x128xf32>
    %23 = tpu.matmul %22, %20, %cst_19 {dimension_numbers = #tpu.dot_dimension_numbers<[1], [0], [0], [1], [0, 0, 1, 1], [], []>} : vector<16x16xbf16>, vector<16x128xbf16>, vector<16x128xf32> -> vector<16x128xf32>
    %24 = arith.addf %17, %23 : vector<16x128xf32>
    %25 = vector.extract_strided_slice %19 {offsets = [0, 1], sizes = [16, 128], strides = [1, 1]} : vector<16x256xbf16> to vector<16x128xbf16>
    %c4 = arith.constant 4 : index
    %c0_20 = arith.constant 0 : index
    %c0_21 = arith.constant 0 : index
    %26 = vector.load %arg5[%c4, %c0_20, %c0_21] : memref<9x16x16xbf16, #tpu.memory_space<vmem>>, vector<1x16x16xbf16>
    %27 = vector.shape_cast %26 : vector<1x16x16xbf16> to vector<16x16xbf16>
    %cst_22 = arith.constant dense<0.000000e+00> : vector<16x128xf32>
    %28 = tpu.matmul %27, %25, %cst_22 {dimension_numbers = #tpu.dot_dimension_numbers<[1], [0], [0], [1], [0, 0, 1, 1], [], []>} : vector<16x16xbf16>, vector<16x128xbf16>, vector<16x128xf32> -> vector<16x128xf32>
    %29 = arith.addf %24, %28 : vector<16x128xf32>
    %30 = vector.extract_strided_slice %19 {offsets = [0, 2], sizes = [16, 128], strides = [1, 1]} : vector<16x256xbf16> to vector<16x128xbf16>
    %c5 = arith.constant 5 : index
    %c0_23 = arith.constant 0 : index
    %c0_24 = arith.constant 0 : index
    %31 = vector.load %arg5[%c5, %c0_23, %c0_24] : memref<9x16x16xbf16, #tpu.memory_space<vmem>>, vector<1x16x16xbf16>
    %32 = vector.shape_cast %31 : vector<1x16x16xbf16> to vector<16x16xbf16>
    %cst_25 = arith.constant dense<0.000000e+00> : vector<16x128xf32>
    %33 = tpu.matmul %32, %30, %cst_25 {dimension_numbers = #tpu.dot_dimension_numbers<[1], [0], [0], [1], [0, 0, 1, 1], [], []>} : vector<16x16xbf16>, vector<16x128xbf16>, vector<16x128xf32> -> vector<16x128xf32>
    %34 = arith.addf %29, %33 : vector<16x128xf32>
    %c0_26 = arith.constant 0 : index
    %c0_27 = arith.constant 0 : index
    %c0_28 = arith.constant 0 : index
    %c0_29 = arith.constant 0 : index
    %35 = vector.load %arg4[%c0_26, %c0_27, %c0_28, %c0_29] : memref<1x1x16x256xbf16, #tpu.memory_space<vmem>>, vector<1x1x16x256xbf16>
    %36 = vector.shape_cast %35 : vector<1x1x16x256xbf16> to vector<16x256xbf16>
    %37 = vector.extract_strided_slice %36 {offsets = [0, 0], sizes = [16, 128], strides = [1, 1]} : vector<16x256xbf16> to vector<16x128xbf16>
    %c6 = arith.constant 6 : index
    %c0_30 = arith.constant 0 : index
    %c0_31 = arith.constant 0 : index
    %38 = vector.load %arg5[%c6, %c0_30, %c0_31] : memref<9x16x16xbf16, #tpu.memory_space<vmem>>, vector<1x16x16xbf16>
    %39 = vector.shape_cast %38 : vector<1x16x16xbf16> to vector<16x16xbf16>
    %cst_32 = arith.constant dense<0.000000e+00> : vector<16x128xf32>
    %40 = tpu.matmul %39, %37, %cst_32 {dimension_numbers = #tpu.dot_dimension_numbers<[1], [0], [0], [1], [0, 0, 1, 1], [], []>} : vector<16x16xbf16>, vector<16x128xbf16>, vector<16x128xf32> -> vector<16x128xf32>
    %41 = arith.addf %34, %40 : vector<16x128xf32>
    %42 = vector.extract_strided_slice %36 {offsets = [0, 1], sizes = [16, 128], strides = [1, 1]} : vector<16x256xbf16> to vector<16x128xbf16>
    %c7 = arith.constant 7 : index
    %c0_33 = arith.constant 0 : index
    %c0_34 = arith.constant 0 : index
    %43 = vector.load %arg5[%c7, %c0_33, %c0_34] : memref<9x16x16xbf16, #tpu.memory_space<vmem>>, vector<1x16x16xbf16>
    %44 = vector.shape_cast %43 : vector<1x16x16xbf16> to vector<16x16xbf16>
    %cst_35 = arith.constant dense<0.000000e+00> : vector<16x128xf32>
    %45 = tpu.matmul %44, %42, %cst_35 {dimension_numbers = #tpu.dot_dimension_numbers<[1], [0], [0], [1], [0, 0, 1, 1], [], []>} : vector<16x16xbf16>, vector<16x128xbf16>, vector<16x128xf32> -> vector<16x128xf32>
    %46 = arith.addf %41, %45 : vector<16x128xf32>
    %47 = vector.extract_strided_slice %36 {offsets = [0, 2], sizes = [16, 128], strides = [1, 1]} : vector<16x256xbf16> to vector<16x128xbf16>
    %c8 = arith.constant 8 : index
    %c0_36 = arith.constant 0 : index
    %c0_37 = arith.constant 0 : index
    %48 = vector.load %arg5[%c8, %c0_36, %c0_37] : memref<9x16x16xbf16, #tpu.memory_space<vmem>>, vector<1x16x16xbf16>
    %49 = vector.shape_cast %48 : vector<1x16x16xbf16> to vector<16x16xbf16>
    %cst_38 = arith.constant dense<0.000000e+00> : vector<16x128xf32>
    %50 = tpu.matmul %49, %47, %cst_38 {dimension_numbers = #tpu.dot_dimension_numbers<[1], [0], [0], [1], [0, 0, 1, 1], [], []>} : vector<16x16xbf16>, vector<16x128xbf16>, vector<16x128xf32> -> vector<16x128xf32>
    %51 = arith.addf %46, %50 : vector<16x128xf32>
    %c0_39 = arith.constant 0 : index
    %c0_40 = arith.constant 0 : index
    %52 = vector.load %arg6[%c0_39, %c0_40] : memref<16x1xf32, #tpu.memory_space<vmem>>, vector<16x1xf32>
    %53 = vector.broadcast %52 : vector<16x1xf32> to vector<16x128xf32>
    %54 = arith.addf %51, %53 : vector<16x128xf32>
    %55 = arith.truncf %54 : vector<16x128xf32> to vector<16x128xbf16>
    %c0_41 = arith.constant 0 : index
    %c0_42 = arith.constant 0 : index
    %c0_43 = arith.constant 0 : index
    %c0_44 = arith.constant 0 : index
    %56 = vector.load %arg7[%c0_41, %c0_42, %c0_43, %c0_44] : memref<1x1x16x128xbf16, #tpu.memory_space<vmem>>, vector<1x1x16x128xbf16>
    %57 = vector.shape_cast %56 : vector<1x1x16x128xbf16> to vector<16x128xbf16>
    %58 = vector.shape_cast %55 : vector<16x128xbf16> to vector<1x1x16x128xbf16>
    tpu.vector_store %arg7[%c0_41, %c0_42, %c0_43, %c0_44], %58 {strides = array<i32>} : memref<1x1x16x128xbf16, #tpu.memory_space<vmem>>, vector<1x1x16x128xbf16>,
    return
  }
  func.func @transform_0(%arg0: i32, %arg1: i32) -> (i32, i32, i32, i32) {
    %c0_i32 = arith.constant 0 : i32
    %0 = arith.addi %arg1, %c0_i32 : i32
    %c0_i32_0 = arith.constant 0 : i32
    %c0_i32_1 = arith.constant 0 : i32
    %c0_i32_2 = arith.constant 0 : i32
    return %arg0, %0, %c0_i32_0, %c0_i32_1 : i32, i32, i32, i32
  }
  func.func @transform_1(%arg0: i32, %arg1: i32) -> (i32, i32, i32, i32) {
    %c1_i32 = arith.constant 1 : i32
    %0 = arith.addi %arg1, %c1_i32 : i32
    %c0_i32 = arith.constant 0 : i32
    %c0_i32_0 = arith.constant 0 : i32
    %c0_i32_1 = arith.constant 0 : i32
    return %arg0, %0, %c0_i32, %c0_i32_0 : i32, i32, i32, i32
  }
  func.func @transform_2(%arg0: i32, %arg1: i32) -> (i32, i32, i32, i32) {
    %c2_i32 = arith.constant 2 : i32
    %0 = arith.addi %arg1, %c2_i32 : i32
    %c0_i32 = arith.constant 0 : i32
    %c0_i32_0 = arith.constant 0 : i32
    %c0_i32_1 = arith.constant 0 : i32
    return %arg0, %0, %c0_i32, %c0_i32_0 : i32, i32, i32, i32
  }
  func.func @transform_3(%arg0: i32, %arg1: i32) -> (i32, i32, i32) {
    %c0_i32 = arith.constant 0 : i32
    %c0_i32_0 = arith.constant 0 : i32
    %c0_i32_1 = arith.constant 0 : i32
    %c0_i32_2 = arith.constant 0 : i32
    return %c0_i32, %c0_i32_0, %c0_i32_1 : i32, i32, i32
  }
  func.func @transform_4(%arg0: i32, %arg1: i32) -> (i32, i32) {
    %c0_i32 = arith.constant 0 : i32
    %c0_i32_0 = arith.constant 0 : i32
    %c0_i32_1 = arith.constant 0 : i32
    return %c0_i32, %c0_i32_0 : i32, i32
  }
  func.func @transform_5(%arg0: i32, %arg1: i32) -> (i32, i32, i32, i32) {
    %c0_i32 = arith.constant 0 : i32
    %c0_i32_0 = arith.constant 0 : i32
    %c0_i32_1 = arith.constant 0 : i32
    return %arg0, %arg1, %c0_i32, %c0_i32_0 : i32, i32, i32, i32
  }
}

</mosaic_0001>

<llo_original>
// kernel: conv_ps_forward.1
$region0: #{conv_ps_forward.1}
  #allocation0 [shape = 'u32[]', space=smem, size = 0x4, offset = 0x4, fixed_abs, tag = 'smem constant byte address 0x4 - core index']
  #allocation1 [shape = 'u32[144,128]{1,0:T(1,128)}', space=vmem, size = 0x12000, scoped, tag = 'internal scratch']
  %s0 = inlined_call_operand.vmem [shape: bf16[2,18,16,256], index: 0, kind: input, shape index: {}, may-alias: {0,1,2}]
  %s1 = inlined_call_operand.vmem [shape: bf16[2,18,16,256], index: 1, kind: input, shape index: {}, may-alias: {0,1,2}]
  %s2 = inlined_call_operand.vmem [shape: bf16[2,18,16,256], index: 2, kind: input, shape index: {}, may-alias: {0,1,2}]
  %s3 = inlined_call_operand.vmem [shape: bf16[9,16,16], index: 3, kind: input, shape index: {}]
  %s4 = inlined_call_operand.vmem [shape: f32[16,1], index: 4, kind: input, shape index: {}]
  %s5 = inlined_call_operand.vmem [shape: bf16[2,16,16,128], index: 5, kind: output, shape index: {}]
  %s6 = sld [smem:[#allocation0]]
  $region53: #{conv_ps_forward.1} parent=0
    _
  %s8 = ssub.s32 1, %s6
  %s9 = scalar_select 0, %s8, %s6
  loop: start=0, step=1, limit=34
  $region2: #{conv_ps_forward.1} parent=0 // loop_pre_header
    _
  $region3: #{conv_ps_forward.1} parent=0 // loop_header
    %s11 = sphi 0, %s15
    %p12 = scmp.ge.s32.totalorder %s11, 34
    %s18 = sphi 0, %s30
    %s19 = sphi 0, %s26
    %s20 = sphi 0, %s18
    %s21 = sphi 0, %s19
    %s22 = sphi 0, %s20
    %s23 = sphi 0, %s21
    %s35 = sphi 0, %s37
    %s38 = sphi 0, %s35
    %s39 = sphi 0, %s38
    %s55 = sphi 0, %s39
    %s65 = sphi 0, %s67
    %s68 = sphi 0, %s65
    %s69 = sphi 0, %s68
    %s85 = sphi 0, %s69
    %s95 = sphi 0, %s97
    %s98 = sphi 0, %s95
    %s99 = sphi 0, %s98
    %s115 = sphi 0, %s99
    %s119 = sphi 0, %s119
    %s121 = sphi 0, %s119
    %s122 = sphi 0, %s121
    %s136 = sphi 0, %s122
    %s140 = sphi 0, %s140
    %s142 = sphi 0, %s140
    %s143 = sphi 0, %s142
    %s157 = sphi 0, %s143
    %s165 = sphi 0, %s167
    %s168 = sphi 0, %s165
    %s169 = sphi 0, %s168
    %s185 = sphi 0, %s169
  $region4: #{conv_ps_forward.1} parent=0 // loop_header_branch
    %14 = sbr.rel (%p12) target = $region8
  $region5: #{conv_ps_forward.1} parent=0 // loop_body
    %s16 = ssub.s32 %s11, 1
    %s17 = ssub.s32 %s11, 2
    %s24 = sadd.s32 1, %s19
    %p25 = scmp.ge.s32.totalorder %s24, 16
    %s26 = scalar_select %p25, 0, %s24
    %s27 = sadd.s32 1, %s18
    %s28 = scalar_select %p25, %s27, %s18
    %p29 = scmp.ge.s32.totalorder %s28, 2
    %s30 = scalar_select %p29, 0, %s28
    %s31 = ssub.s32 %s18, %s30
    %s32 = ssub.s32 %s19, %s26
    %s33 = sor.u32 %s31, %s32
    %p34 = scmp.eq.s32.totalorder %s33, 0
    %s36 = sadd.s32 %s35, 1
    %s37 = scalar_select %p34, %s35, %s36
    %p40 = pneg %p34
    %p41 = scmp.eq.s32.totalorder %s11, 31
    %p42 = por %p40, %p41
    %p43 = scmp.ne.s32.totalorder %s35, %s38
    %p44 = scmp.eq.s32.totalorder %s11, 0
    %p45 = por %p43, %p44
    %p46 = scmp.ne.s32.totalorder %s35, %s38
    %p47 = scmp.eq.s32.totalorder %s16, 31
    %p48 = por %p46, %p47
    %p49 = scmp.ne.s32.totalorder %s38, %s39
    %p50 = scmp.eq.s32.totalorder %s16, 0
    %p51 = por %p49, %p50
    %p52 = scmp.ne.s32.totalorder %s38, %s39
    %p53 = scmp.eq.s32.totalorder %s17, 31
    %p54 = por %p52, %p53
    %p56 = scmp.ne.s32.totalorder %s39, %s55
    %p57 = scmp.eq.s32.totalorder %s17, 0
    %p58 = por %p56, %p57
    %s59 = sadd.s32 %s19, 1
    %s60 = sadd.s32 %s26, 1
    %s61 = ssub.s32 %s18, %s30
    %s62 = ssub.s32 %s59, %s60
    %s63 = sor.u32 %s61, %s62
    %p64 = scmp.eq.s32.totalorder %s63, 0
    %s66 = sadd.s32 %s65, 1
    %s67 = scalar_select %p64, %s65, %s66
    %p70 = pneg %p64
    %p71 = scmp.eq.s32.totalorder %s11, 31
    %p72 = por %p70, %p71
    %p73 = scmp.ne.s32.totalorder %s65, %s68
    %p74 = scmp.eq.s32.totalorder %s11, 0
    %p75 = por %p73, %p74
    %p76 = scmp.ne.s32.totalorder %s65, %s68
    %p77 = scmp.eq.s32.totalorder %s16, 31
    %p78 = por %p76, %p77
    %p79 = scmp.ne.s32.totalorder %s68, %s69
    %p80 = scmp.eq.s32.totalorder %s16, 0
    %p81 = por %p79, %p80
    %p82 = scmp.ne.s32.totalorder %s68, %s69
    %p83 = scmp.eq.s32.totalorder %s17, 31
    %p84 = por %p82, %p83
    %p86 = scmp.ne.s32.totalorder %s69, %s85
    %p87 = scmp.eq.s32.totalorder %s17, 0
    %p88 = por %p86, %p87
    %s89 = sadd.s32 %s19, 2
    %s90 = sadd.s32 %s26, 2
    %s91 = ssub.s32 %s18, %s30
    %s92 = ssub.s32 %s89, %s90
    %s93 = sor.u32 %s91, %s92
    %p94 = scmp.eq.s32.totalorder %s93, 0
    %s96 = sadd.s32 %s95, 1
    %s97 = scalar_select %p94, %s95, %s96
    %p100 = pneg %p94
    %p101 = scmp.eq.s32.totalorder %s11, 31
    %p102 = por %p100, %p101
    %p103 = scmp.ne.s32.totalorder %s95, %s98
    %p104 = scmp.eq.s32.totalorder %s11, 0
    %p105 = por %p103, %p104
    %p106 = scmp.ne.s32.totalorder %s95, %s98
    %p107 = scmp.eq.s32.totalorder %s16, 31
    %p108 = por %p106, %p107
    %p109 = scmp.ne.s32.totalorder %s98, %s99
    %p110 = scmp.eq.s32.totalorder %s16, 0
    %p111 = por %p109, %p110
    %p112 = scmp.ne.s32.totalorder %s98, %s99
    %p113 = scmp.eq.s32.totalorder %s17, 31
    %p114 = por %p112, %p113
    %p116 = scmp.ne.s32.totalorder %s99, %s115
    %p117 = scmp.eq.s32.totalorder %s17, 0
    %p118 = por %p116, %p117
    %s120 = sadd.s32 %s119, 1
    %p123 = scmp.eq.s32.totalorder %s11, 31
    %p124 = scmp.ne.s32.totalorder %s119, %s121
    %p125 = scmp.eq.s32.totalorder %s11, 0
    %p126 = por %p124, %p125
    %p127 = scmp.ne.s32.totalorder %s119, %s121
    %p128 = scmp.eq.s32.totalorder %s16, 31
    %p129 = por %p127, %p128
    %p130 = scmp.ne.s32.totalorder %s121, %s122
    %p131 = scmp.eq.s32.totalorder %s16, 0
    %p132 = por %p130, %p131
    %p133 = scmp.ne.s32.totalorder %s121, %s122
    %p134 = scmp.eq.s32.totalorder %s17, 31
    %p135 = por %p133, %p134
    %p137 = scmp.ne.s32.totalorder %s122, %s136
    %p138 = scmp.eq.s32.totalorder %s17, 0
    %p139 = por %p137, %p138
    %s141 = sadd.s32 %s140, 1
    %p144 = scmp.eq.s32.totalorder %s11, 31
    %p145 = scmp.ne.s32.totalorder %s140, %s142
    %p146 = scmp.eq.s32.totalorder %s11, 0
    %p147 = por %p145, %p146
    %p148 = scmp.ne.s32.totalorder %s140, %s142
    %p149 = scmp.eq.s32.totalorder %s16, 31
    %p150 = por %p148, %p149
    %p151 = scmp.ne.s32.totalorder %s142, %s143
    %p152 = scmp.eq.s32.totalorder %s16, 0
    %p153 = por %p151, %p152
    %p154 = scmp.ne.s32.totalorder %s142, %s143
    %p155 = scmp.eq.s32.totalorder %s17, 31
    %p156 = por %p154, %p155
    %p158 = scmp.ne.s32.totalorder %s143, %s157
    %p159 = scmp.eq.s32.totalorder %s17, 0
    %p160 = por %p158, %p159
    %s161 = ssub.s32 %s18, %s30
    %s162 = ssub.s32 %s19, %s26
    %s163 = sor.u32 %s161, %s162
    %p164 = scmp.eq.s32.totalorder %s163, 0
    %s166 = sadd.s32 %s165, 1
    %s167 = scalar_select %p164, %s165, %s166
    %p170 = pneg %p164
    %p171 = scmp.eq.s32.totalorder %s11, 31
    %p172 = por %p170, %p171
    %p173 = scmp.ne.s32.totalorder %s165, %s168
    %p174 = scmp.eq.s32.totalorder %s11, 0
    %p175 = por %p173, %p174
    %p176 = scmp.ne.s32.totalorder %s165, %s168
    %p177 = scmp.eq.s32.totalorder %s16, 31
    %p178 = por %p176, %p177
    %p179 = scmp.ne.s32.totalorder %s168, %s169
    %p180 = scmp.eq.s32.totalorder %s16, 0
    %p181 = por %p179, %p180
    %p182 = scmp.ne.s32.totalorder %s168, %s169
    %p183 = scmp.eq.s32.totalorder %s17, 31
    %p184 = por %p182, %p183
    %p186 = scmp.ne.s32.totalorder %s169, %s185
    %p187 = scmp.eq.s32.totalorder %s17, 0
    %p188 = por %p186, %p187
    %p189 = scmp.le.s32.totalorder 1, %s11
    %p190 = scmp.lt.s32.totalorder %s11, 33
    %p191 = pnand %p189, %p190
    %p192 = pneg %p191
    // Predicated region
    $region9: #{conv_ps_forward.1} parent=5 // pred_check
      _
    $region10: #{conv_ps_forward.1} parent=5 // pred_check_branch
      %194 = sbr.rel (%p191) target = $region12
    $region11: #{conv_ps_forward.1} parent=5 // pred_region
      %s195 = ssub.s32 %s11, 1
      // Predicated region
      $region13: #{conv_ps_forward.1} parent=11 // pred_check
        %p196 = pneg %p132
      $region14: #{conv_ps_forward.1} parent=11 // pred_check_branch
        %198 = sbr.rel (%p196) target = $region16
      $region15: #{conv_ps_forward.1} parent=11 // pred_region
        _
      $region16: #{conv_ps_forward.1} parent=11 // pred_fallthru
        _
      // Predicated region
      $region17: #{conv_ps_forward.1} parent=11 // pred_check
        %p199 = pneg %p153
      $region18: #{conv_ps_forward.1} parent=11 // pred_check_branch
        %201 = sbr.rel (%p199) target = $region20
      $region19: #{conv_ps_forward.1} parent=11 // pred_region
        _
      $region20: #{conv_ps_forward.1} parent=11 // pred_fallthru
        _
    $region12: #{conv_ps_forward.1} parent=5 // pred_fallthru
      _
    %p202 = scmp.lt.s32.totalorder %s11, 32
    // Predicated region
    $region21: #{conv_ps_forward.1} parent=5 // pred_check
      %p203 = pneg %p202
    $region22: #{conv_ps_forward.1} parent=5 // pred_check_branch
      %205 = sbr.rel (%p203) target = $region24
    $region23: #{conv_ps_forward.1} parent=5 // pred_region
      // Predicated region
      $region25: #{conv_ps_forward.1} parent=23 // pred_check
        %p206 = pneg %p45
      $region26: #{conv_ps_forward.1} parent=23 // pred_check_branch
        %208 = sbr.rel (%p206) target = $region28
      $region27: #{conv_ps_forward.1} parent=23 // pred_region
        %p209 = scmp.lt.s32.totalorder %s18, 1
        %s210 = scalar_select %p209, %s18, 1
        %p211 = scmp.lt.s32.totalorder %s19, 17
        %s212 = scalar_select %p211, %s19, 17
        %s213 = smul.addr %s212, 4
        %s214 = smul.addr %s210, 72
        %s215 = sadd.s32 %s213, %s214
        %s216 = smul.addr %s215, 4
        %s217 = scalar_lea.vmem %s0, %s216
      $region28: #{conv_ps_forward.1} parent=23 // pred_fallthru
        _
      // Predicated region
      $region29: #{conv_ps_forward.1} parent=23 // pred_check
        %p218 = pneg %p75
      $region30: #{conv_ps_forward.1} parent=23 // pred_check_branch
        %220 = sbr.rel (%p218) target = $region32
      $region31: #{conv_ps_forward.1} parent=23 // pred_region
        %s221 = sadd.s32 %s19, 1
        %p222 = scmp.lt.s32.totalorder %s18, 1
        %s223 = scalar_select %p222, %s18, 1
        %p224 = scmp.lt.s32.totalorder %s221, 17
        %s225 = scalar_select %p224, %s221, 17
        %s226 = smul.addr %s225, 4
        %s227 = smul.addr %s223, 72
        %s228 = sadd.s32 %s226, %s227
        %s229 = smul.addr %s228, 4
        %s230 = scalar_lea.vmem %s1, %s229
        %s231 = sadd.s32 %s19, 1
      $region32: #{conv_ps_forward.1} parent=23 // pred_fallthru
        _
      // Predicated region
      $region33: #{conv_ps_forward.1} parent=23 // pred_check
        %p232 = pneg %p105
      $region34: #{conv_ps_forward.1} parent=23 // pred_check_branch
        %234 = sbr.rel (%p232) target = $region36
      $region35: #{conv_ps_forward.1} parent=23 // pred_region
        %s235 = sadd.s32 %s19, 2
        %p236 = scmp.lt.s32.totalorder %s18, 1
        %s237 = scalar_select %p236, %s18, 1
        %p238 = scmp.lt.s32.totalorder %s235, 17
        %s239 = scalar_select %p238, %s235, 17
        %s240 = smul.addr %s239, 4
        %s241 = smul.addr %s237, 72
        %s242 = sadd.s32 %s240, %s241
        %s243 = smul.addr %s242, 4
        %s244 = scalar_lea.vmem %s2, %s243
        %s245 = sadd.s32 %s19, 2
      $region36: #{conv_ps_forward.1} parent=23 // pred_fallthru
        _
    $region24: #{conv_ps_forward.1} parent=5 // pred_fallthru
      _
    %p246 = scmp.le.s32.totalorder 1, %s11
    %p247 = scmp.lt.s32.totalorder %s11, 33
    %p248 = pnand %p246, %p247
    %p249 = pneg %p248
    // Predicated region
    $region37: #{conv_ps_forward.1} parent=5 // pred_check
      _
    $region38: #{conv_ps_forward.1} parent=5 // pred_check_branch
      %251 = sbr.rel (%p248) target = $region40
    $region39: #{conv_ps_forward.1} parent=5 // pred_region
      %s252 = ssub.s32 %s11, 1
      %p253 = scmp.lt.s32.totalorder %s20, 1
      %s254 = scalar_select %p253, %s20, 1
      %p255 = scmp.lt.s32.totalorder %s21, 17
      %s256 = scalar_select %p255, %s21, 17
      %s257 = smul.addr %s256, 4
      %s258 = smul.addr %s254, 72
      %s259 = sadd.s32 %s257, %s258
      %s260 = smul.addr %s259, 4
      %s261 = scalar_lea.vmem %s0, %s260
      %p262 = pneg %p51
      %p263 = pneg %p48
      %s264 = sadd.s32 %s21, 1
      %p265 = scmp.lt.s32.totalorder %s20, 1
      %s266 = scalar_select %p265, %s20, 1
      %p267 = scmp.lt.s32.totalorder %s264, 17
      %s268 = scalar_select %p267, %s264, 17
      %s269 = smul.addr %s268, 4
      %s270 = smul.addr %s266, 72
      %s271 = sadd.s32 %s269, %s270
      %s272 = smul.addr %s271, 4
      %s273 = scalar_lea.vmem %s1, %s272
      %p274 = pneg %p81
      %p275 = pneg %p78
      %s276 = sadd.s32 %s21, 2
      %p277 = scmp.lt.s32.totalorder %s20, 1
      %s278 = scalar_select %p277, %s20, 1
      %p279 = scmp.lt.s32.totalorder %s276, 17
      %s280 = scalar_select %p279, %s276, 17
      %s281 = smul.addr %s280, 4
      %s282 = smul.addr %s278, 72
      %s283 = sadd.s32 %s281, %s282
      %s284 = smul.addr %s283, 4
      %s285 = scalar_lea.vmem %s2, %s284
      %p286 = pneg %p111
      %p287 = pneg %p108
      %p288 = pneg %p132
      %p289 = pneg %p129
      %p290 = pneg %p153
      %p291 = pneg %p150
      %p292 = pneg %p181
      %p293 = pneg %p178
      %p294 = scmp.lt.s32.totalorder %s20, 1
      %s295 = scalar_select %p294, %s20, 1
      %p296 = scmp.lt.s32.totalorder %s21, 15
      %s297 = scalar_select %p296, %s21, 15
      %s298 = smul.addr %s297, 2
      %s299 = smul.addr %s295, 32
      %s300 = sadd.s32 %s298, %s299
      %s301 = smul.addr %s300, 4
      %s302 = scalar_lea.vmem %s5, %s301
      %p303 = scmp.lt.s32.totalorder %s20, 1
      %s304 = scalar_select %p303, %s20, 1
      %p305 = scmp.lt.s32.totalorder %s21, 17
      %s306 = scalar_select %p305, %s21, 17
      %s307 = smul.addr %s306, 4
      %s308 = smul.addr %s304, 72
      %s309 = sadd.s32 %s307, %s308
      %s310 = smul.addr %s309, 4
      %s311 = scalar_lea.vmem %s0, %s310
      %s312 = sadd.s32 %s21, 1
      %p313 = scmp.lt.s32.totalorder %s20, 1
      %s314 = scalar_select %p313, %s20, 1
      %p315 = scmp.lt.s32.totalorder %s312, 17
      %s316 = scalar_select %p315, %s312, 17
      %s317 = smul.addr %s316, 4
      %s318 = smul.addr %s314, 72
      %s319 = sadd.s32 %s317, %s318
      %s320 = smul.addr %s319, 4
      %s321 = scalar_lea.vmem %s1, %s320
      %s322 = sadd.s32 %s21, 1
      %s323 = sadd.s32 %s21, 2
      %p324 = scmp.lt.s32.totalorder %s20, 1
      %s325 = scalar_select %p324, %s20, 1
      %p326 = scmp.lt.s32.totalorder %s323, 17
      %s327 = scalar_select %p326, %s323, 17
      %s328 = smul.addr %s327, 4
      %s329 = smul.addr %s325, 72
      %s330 = sadd.s32 %s328, %s329
      %s331 = smul.addr %s330, 4
      %s332 = scalar_lea.vmem %s2, %s331
      %s333 = sadd.s32 %s21, 2
      %p334 = scmp.lt.s32.totalorder %s20, 1
      %s335 = scalar_select %p334, %s20, 1
      %p336 = scmp.lt.s32.totalorder %s21, 15
      %s337 = scalar_select %p336, %s21, 15
      %s338 = smul.addr %s337, 2
      %s339 = smul.addr %s335, 32
      %s340 = sadd.s32 %s338, %s339
      %s341 = smul.addr %s340, 4
      %s342 = scalar_lea.vmem %s5, %s341
      %v344 = vld [vmem:[%s311] sm:$0xff]
      %v345 = vld [vmem:[%s311 + $0x8] sm:$0xff]
      %v346 = vld [vmem:[%s3] sm:$0xf]
      %v347 = vld [vmem:[%s3 + $0x4] sm:$0xf]
      %s348 = scalar_lea.vmem %s3, 8
      %v349 = vld [vmem:[%s348] sm:$0xf]
      %v350 = vld [vmem:[%s348 + $0x4] sm:$0xf]
      %v353 = vunpack.c.l.b16 %v349
      %v354 = vunpack.c.l.b16 %v350
      %v355 = vpack.c.b16 %v354, %v353
      %v358 = vunpack.c.l.b16 %v344
      %v359 = vunpack.c.h.b16 %v344
      %v360 = vunpack.c.l.b16 %v345
      %v361 = vunpack.c.h.b16 %v345
      %v362 = vpack.c.b16 %v360, %v358
      %v363 = vpack.c.b16 %v361, %v359
      %364 = vrot.lane.b32.xlu0 %v362, 127
      %v365 = vpop.permute.xlu0 %364
      %366 = vrot.lane.b32.xlu0 %v363, 127
      %v367 = vpop.permute.xlu0 %366
      %vm368 = vcmask 1039360
      %v369 = vsel %vm368, %v365, %v367
      %vm371 = vcmask 130048
      %v373 = vsel %vm371, %v355, 0
      %375 = vmatprep.subr.bf16.mxu0 0
      %376 = vmatpush1.bf16.msra.mxu0 0
      %377 = vmatprep.subr.bf16.mxu0 0
      %378 = vmatpush1.bf16.msra.mxu0 0
      %379 = vmatprep.subr.bf16.mxu0 0
      %380 = vmatpush1.bf16.msra.mxu0 0
      %381 = vmatprep.subr.bf16.mxu0 0
      %382 = vmatpush1.bf16.msra.mxu0 0
      %383 = vmatprep.subr.bf16.mxu0 0
      %384 = vmatpush1.bf16.msra.mxu0 0
      %385 = vmatprep.subr.bf16.mxu0 0
      %386 = vmatpush1.bf16.msra.mxu0 0
      %387 = vmatprep.subr.bf16.mxu0 0
      %388 = vmatpush1.bf16.msra.mxu0 0
      %389 = vmatprep.subr.bf16.mxu0 0
      %390 = vmatpush1.bf16.msra.mxu0 %v369
      %391 = vmatprep.subr.bf16.mxu0 0
      %392 = vmatpush2.bf16.msra.mxu0 0
      %393 = vmatprep.subr.bf16.mxu0 0
      %394 = vmatpush2.bf16.msra.mxu0 0
      %395 = vmatprep.subr.bf16.mxu0 0
      %396 = vmatpush2.bf16.msra.mxu0 0
      %397 = vmatprep.subr.bf16.mxu0 0
      %398 = vmatpush2.bf16.msra.mxu0 0
      %399 = vmatprep.subr.bf16.mxu0 0
      %400 = vmatpush2.bf16.msra.mxu0 0
      %401 = vmatprep.subr.bf16.mxu0 0
      %402 = vmatpush2.bf16.msra.mxu0 0
      %403 = vmatprep.subr.bf16.mxu0 0
      %404 = vmatpush2.bf16.msra.mxu0 0
      %405 = vmatprep.subr.bf16.mxu0 0
      %406 = vmatpush2.bf16.msra.mxu0 0
      %407 = vmatprep.mubr.bf16.mxu0 0
      %408 = vmatmul.mubr.bf16.gmra.mxu0 %v373
      %v409 = vpop.f32.mrf.mxu0
      %v410 = vadd.f32 0.0, %v409
      %v411 = vpop.f32.mrf.mxu0
      %v412 = vpop.f32.mrf.mxu0
      %v413 = vadd.f32 0.0, %v412
      %v414 = vpop.f32.mrf.mxu0
      %415 = vdwg.mxu0
      %v418 = vunpack.c.l.b16 %v346
      %v419 = vunpack.c.l.b16 %v347
      %v420 = vpack.c.b16 %v419, %v418
      %v423 = vsel %vm371, %v420, 0
      %425 = vmatprep.subr.bf16.mxu0 0
      %426 = vmatpush1.bf16.msra.mxu0 0
      %427 = vmatprep.subr.bf16.mxu0 0
      %428 = vmatpush1.bf16.msra.mxu0 0
      %429 = vmatprep.subr.bf16.mxu0 0
      %430 = vmatpush1.bf16.msra.mxu0 0
      %431 = vmatprep.subr.bf16.mxu0 0
      %432 = vmatpush1.bf16.msra.mxu0 0
      %433 = vmatprep.subr.bf16.mxu0 0
      %434 = vmatpush1.bf16.msra.mxu0 0
      %435 = vmatprep.subr.bf16.mxu0 0
      %436 = vmatpush1.bf16.msra.mxu0 0
      %437 = vmatprep.subr.bf16.mxu0 0
      %438 = vmatpush1.bf16.msra.mxu0 0
      %439 = vmatprep.subr.bf16.mxu0 0
      %440 = vmatpush1.bf16.msra.mxu0 %v362
      %441 = vmatprep.subr.bf16.mxu0 0
      %442 = vmatpush2.bf16.msra.mxu0 0
      %443 = vmatprep.subr.bf16.mxu0 0
      %444 = vmatpush2.bf16.msra.mxu0 0
      %445 = vmatprep.subr.bf16.mxu0 0
      %446 = vmatpush2.bf16.msra.mxu0 0
      %447 = vmatprep.subr.bf16.mxu0 0
      %448 = vmatpush2.bf16.msra.mxu0 0
      %449 = vmatprep.subr.bf16.mxu0 0
      %450 = vmatpush2.bf16.msra.mxu0 0
      %451 = vmatprep.subr.bf16.mxu0 0
      %452 = vmatpush2.bf16.msra.mxu0 0
      %453 = vmatprep.subr.bf16.mxu0 0
      %454 = vmatpush2.bf16.msra.mxu0 0
      %455 = vmatprep.subr.bf16.mxu0 0
      %456 = vmatpush2.bf16.msra.mxu0 0
      %457 = vmatprep.mubr.bf16.mxu0 0
      %458 = vmatmul.mubr.bf16.gmra.mxu0 %v423
      %v459 = vpop.f32.mrf.mxu0
      %v460 = vadd.f32 %v410, %v459
      %v461 = vpop.f32.mrf.mxu0
      %v462 = vpop.f32.mrf.mxu0
      %v463 = vadd.f32 %v413, %v462
      %v464 = vpop.f32.mrf.mxu0
      %465 = vdwg.mxu0
      %s466 = scalar_lea.vmem %s3, 16
      %v467 = vld [vmem:[%s466] sm:$0xf]
      %v468 = vld [vmem:[%s466 + $0x4] sm:$0xf]
      %v471 = vunpack.c.l.b16 %v467
      %v472 = vunpack.c.l.b16 %v468
      %v473 = vpack.c.b16 %v472, %v471
      %474 = vrot.lane.b32.xlu0 %v362, 126
      %v475 = vpop.permute.xlu0 %474
      %476 = vrot.lane.b32.xlu0 %v363, 126
      %v477 = vpop.permute.xlu0 %476
      %vm478 = vcmask 1031168
      %v479 = vsel %vm478, %v475, %v477
      %v482 = vsel %vm371, %v473, 0
      %484 = vmatprep.subr.bf16.mxu0 0
      %485 = vmatpush1.bf16.msra.mxu0 0
      %486 = vmatprep.subr.bf16.mxu0 0
      %487 = vmatpush1.bf16.msra.mxu0 0
      %488 = vmatprep.subr.bf16.mxu0 0
      %489 = vmatpush1.bf16.msra.mxu0 0
      %490 = vmatprep.subr.bf16.mxu0 0
      %491 = vmatpush1.bf16.msra.mxu0 0
      %492 = vmatprep.subr.bf16.mxu0 0
      %493 = vmatpush1.bf16.msra.mxu0 0
      %494 = vmatprep.subr.bf16.mxu0 0
      %495 = vmatpush1.bf16.msra.mxu0 0
      %496 = vmatprep.subr.bf16.mxu0 0
      %497 = vmatpush1.bf16.msra.mxu0 0
      %498 = vmatprep.subr.bf16.mxu0 0
      %499 = vmatpush1.bf16.msra.mxu0 %v479
      %500 = vmatprep.subr.bf16.mxu0 0
      %501 = vmatpush2.bf16.msra.mxu0 0
      %502 = vmatprep.subr.bf16.mxu0 0
      %503 = vmatpush2.bf16.msra.mxu0 0
      %504 = vmatprep.subr.bf16.mxu0 0
      %505 = vmatpush2.bf16.msra.mxu0 0
      %506 = vmatprep.subr.bf16.mxu0 0
      %507 = vmatpush2.bf16.msra.mxu0 0
      %508 = vmatprep.subr.bf16.mxu0 0
      %509 = vmatpush2.bf16.msra.mxu0 0
      %510 = vmatprep.subr.bf16.mxu0 0
      %511 = vmatpush2.bf16.msra.mxu0 0
      %512 = vmatprep.subr.bf16.mxu0 0
      %513 = vmatpush2.bf16.msra.mxu0 0
      %514 = vmatprep.subr.bf16.mxu0 0
      %515 = vmatpush2.bf16.msra.mxu0 0
      %516 = vmatprep.mubr.bf16.mxu0 0
      %517 = vmatmul.mubr.bf16.gmra.mxu0 %v482
      %v518 = vpop.f32.mrf.mxu0
      %v519 = vadd.f32 0.0, %v518
      %v520 = vpop.f32.mrf.mxu0
      %v521 = vpop.f32.mrf.mxu0
      %v522 = vadd.f32 0.0, %v521
      %v523 = vpop.f32.mrf.mxu0
      %524 = vdwg.mxu0
      %v525 = vadd.f32 %v460, %v519
      %v526 = vadd.f32 %v463, %v522
      %v527 = vld [vmem:[%s321] sm:$0xff]
      %v528 = vld [vmem:[%s321 + $0x8] sm:$0xff]
      %s529 = scalar_lea.vmem %s3, 24
      %v530 = vld [vmem:[%s529] sm:$0xf]
      %v531 = vld [vmem:[%s529 + $0x4] sm:$0xf]
      %v534 = vunpack.c.l.b16 %v530
      %v535 = vunpack.c.l.b16 %v531
      %v536 = vpack.c.b16 %v535, %v534
      %v539 = vunpack.c.l.b16 %v527
      %v540 = vunpack.c.l.b16 %v528
      %v541 = vpack.c.b16 %v540, %v539
      %v544 = vsel %vm371, %v536, 0
      %546 = vmatprep.subr.bf16.mxu0 0
      %547 = vmatpush1.bf16.msra.mxu0 0
      %548 = vmatprep.subr.bf16.mxu0 0
      %549 = vmatpush1.bf16.msra.mxu0 0
      %550 = vmatprep.subr.bf16.mxu0 0
      %551 = vmatpush1.bf16.msra.mxu0 0
      %552 = vmatprep.subr.bf16.mxu0 0
      %553 = vmatpush1.bf16.msra.mxu0 0
      %554 = vmatprep.subr.bf16.mxu0 0
      %555 = vmatpush1.bf16.msra.mxu0 0
      %556 = vmatprep.subr.bf16.mxu0 0
      %557 = vmatpush1.bf16.msra.mxu0 0
      %558 = vmatprep.subr.bf16.mxu0 0
      %559 = vmatpush1.bf16.msra.mxu0 0
      %560 = vmatprep.subr.bf16.mxu0 0
      %561 = vmatpush1.bf16.msra.mxu0 %v541
      %562 = vmatprep.subr.bf16.mxu0 0
      %563 = vmatpush2.bf16.msra.mxu0 0
      %564 = vmatprep.subr.bf16.mxu0 0
      %565 = vmatpush2.bf16.msra.mxu0 0
      %566 = vmatprep.subr.bf16.mxu0 0
      %567 = vmatpush2.bf16.msra.mxu0 0
      %568 = vmatprep.subr.bf16.mxu0 0
      %569 = vmatpush2.bf16.msra.mxu0 0
      %570 = vmatprep.subr.bf16.mxu0 0
      %571 = vmatpush2.bf16.msra.mxu0 0
      %572 = vmatprep.subr.bf16.mxu0 0
      %573 = vmatpush2.bf16.msra.mxu0 0
      %574 = vmatprep.subr.bf16.mxu0 0
      %575 = vmatpush2.bf16.msra.mxu0 0
      %576 = vmatprep.subr.bf16.mxu0 0
      %577 = vmatpush2.bf16.msra.mxu0 0
      %578 = vmatprep.mubr.bf16.mxu0 0
      %579 = vmatmul.mubr.bf16.gmra.mxu0 %v544
      %v580 = vpop.f32.mrf.mxu0
      %v581 = vadd.f32 0.0, %v580
      %v582 = vpop.f32.mrf.mxu0
      %v583 = vpop.f32.mrf.mxu0
      %v584 = vadd.f32 0.0, %v583
      %v585 = vpop.f32.mrf.mxu0
      %586 = vdwg.mxu0
      %v587 = vadd.f32 %v525, %v581
      %v588 = vadd.f32 %v526, %v584
      %s589 = scalar_lea.vmem %s3, 32
      %v590 = vld [vmem:[%s589] sm:$0xf]
      %v591 = vld [vmem:[%s589 + $0x4] sm:$0xf]
      %v594 = vunpack.c.l.b16 %v590
      %v595 = vunpack.c.l.b16 %v591
      %v596 = vpack.c.b16 %v595, %v594
      %v597 = vunpack.c.h.b16 %v527
      %v598 = vunpack.c.h.b16 %v528
      %v599 = vpack.c.b16 %v598, %v597
      %600 = vrot.lane.b32.xlu0 %v541, 127
      %v601 = vpop.permute.xlu0 %600
      %602 = vrot.lane.b32.xlu0 %v599, 127
      %v603 = vpop.permute.xlu0 %602
      %v604 = vsel %vm368, %v601, %v603
      %v607 = vsel %vm371, %v596, 0
      %609 = vmatprep.subr.bf16.mxu0 0
      %610 = vmatpush1.bf16.msra.mxu0 0
      %611 = vmatprep.subr.bf16.mxu0 0
      %612 = vmatpush1.bf16.msra.mxu0 0
      %613 = vmatprep.subr.bf16.mxu0 0
      %614 = vmatpush1.bf16.msra.mxu0 0
      %615 = vmatprep.subr.bf16.mxu0 0
      %616 = vmatpush1.bf16.msra.mxu0 0
      %617 = vmatprep.subr.bf16.mxu0 0
      %618 = vmatpush1.bf16.msra.mxu0 0
      %619 = vmatprep.subr.bf16.mxu0 0
      %620 = vmatpush1.bf16.msra.mxu0 0
      %621 = vmatprep.subr.bf16.mxu0 0
      %622 = vmatpush1.bf16.msra.mxu0 0
      %623 = vmatprep.subr.bf16.mxu0 0
      %624 = vmatpush1.bf16.msra.mxu0 %v604
      %625 = vmatprep.subr.bf16.mxu0 0
      %626 = vmatpush2.bf16.msra.mxu0 0
      %627 = vmatprep.subr.bf16.mxu0 0
      %628 = vmatpush2.bf16.msra.mxu0 0
      %629 = vmatprep.subr.bf16.mxu0 0
      %630 = vmatpush2.bf16.msra.mxu0 0
      %631 = vmatprep.subr.bf16.mxu0 0
      %632 = vmatpush2.bf16.msra.mxu0 0
      %633 = vmatprep.subr.bf16.mxu0 0
      %634 = vmatpush2.bf16.msra.mxu0 0
      %635 = vmatprep.subr.bf16.mxu0 0
      %636 = vmatpush2.bf16.msra.mxu0 0
      %637 = vmatprep.subr.bf16.mxu0 0
      %638 = vmatpush2.bf16.msra.mxu0 0
      %639 = vmatprep.subr.bf16.mxu0 0
      %640 = vmatpush2.bf16.msra.mxu0 0
      %641 = vmatprep.mubr.bf16.mxu0 0
      %642 = vmatmul.mubr.bf16.gmra.mxu0 %v607
      %v643 = vpop.f32.mrf.mxu0
      %v644 = vadd.f32 0.0, %v643
      %v645 = vpop.f32.mrf.mxu0
      %v646 = vpop.f32.mrf.mxu0
      %v647 = vadd.f32 0.0, %v646
      %v648 = vpop.f32.mrf.mxu0
      %649 = vdwg.mxu0
      %v650 = vadd.f32 %v587, %v644
      %v651 = vadd.f32 %v588, %v647
      %s652 = scalar_lea.vmem %s3, 40
      %v653 = vld [vmem:[%s652] sm:$0xf]
      %v654 = vld [vmem:[%s652 + $0x4] sm:$0xf]
      %v657 = vunpack.c.l.b16 %v653
      %v658 = vunpack.c.l.b16 %v654
      %v659 = vpack.c.b16 %v658, %v657
      %660 = vrot.lane.b32.xlu0 %v541, 126
      %v661 = vpop.permute.xlu0 %660
      %662 = vrot.lane.b32.xlu0 %v599, 126
      %v663 = vpop.permute.xlu0 %662
      %v664 = vsel %vm478, %v661, %v663
      %v667 = vsel %vm371, %v659, 0
      %669 = vmatprep.subr.bf16.mxu0 0
      %670 = vmatpush1.bf16.msra.mxu0 0
      %671 = vmatprep.subr.bf16.mxu0 0
      %672 = vmatpush1.bf16.msra.mxu0 0
      %673 = vmatprep.subr.bf16.mxu0 0
      %674 = vmatpush1.bf16.msra.mxu0 0
      %675 = vmatprep.subr.bf16.mxu0 0
      %676 = vmatpush1.bf16.msra.mxu0 0
      %677 = vmatprep.subr.bf16.mxu0 0
      %678 = vmatpush1.bf16.msra.mxu0 0
      %679 = vmatprep.subr.bf16.mxu0 0
      %680 = vmatpush1.bf16.msra.mxu0 0
      %681 = vmatprep.subr.bf16.mxu0 0
      %682 = vmatpush1.bf16.msra.mxu0 0
      %683 = vmatprep.subr.bf16.mxu0 0
      %684 = vmatpush1.bf16.msra.mxu0 %v664
      %685 = vmatprep.subr.bf16.mxu0 0
      %686 = vmatpush2.bf16.msra.mxu0 0
      %687 = vmatprep.subr.bf16.mxu0 0
      %688 = vmatpush2.bf16.msra.mxu0 0
      %689 = vmatprep.subr.bf16.mxu0 0
      %690 = vmatpush2.bf16.msra.mxu0 0
      %691 = vmatprep.subr.bf16.mxu0 0
      %692 = vmatpush2.bf16.msra.mxu0 0
      %693 = vmatprep.subr.bf16.mxu0 0
      %694 = vmatpush2.bf16.msra.mxu0 0
      %695 = vmatprep.subr.bf16.mxu0 0
      %696 = vmatpush2.bf16.msra.mxu0 0
      %697 = vmatprep.subr.bf16.mxu0 0
      %698 = vmatpush2.bf16.msra.mxu0 0
      %699 = vmatprep.subr.bf16.mxu0 0
      %700 = vmatpush2.bf16.msra.mxu0 0
      %701 = vmatprep.mubr.bf16.mxu0 0
      %702 = vmatmul.mubr.bf16.gmra.mxu0 %v667
      %v703 = vpop.f32.mrf.mxu0
      %v704 = vadd.f32 0.0, %v703
      %v705 = vpop.f32.mrf.mxu0
      %v706 = vpop.f32.mrf.mxu0
      %v707 = vadd.f32 0.0, %v706
      %v708 = vpop.f32.mrf.mxu0
      %709 = vdwg.mxu0
      %v710 = vadd.f32 %v650, %v704
      %v711 = vadd.f32 %v651, %v707
      %v712 = vld [vmem:[%s332] sm:$0xff]
      %v713 = vld [vmem:[%s332 + $0x8] sm:$0xff]
      %s714 = scalar_lea.vmem %s3, 48
      %v715 = vld [vmem:[%s714] sm:$0xf]
      %v716 = vld [vmem:[%s714 + $0x4] sm:$0xf]
      %v719 = vunpack.c.l.b16 %v715
      %v720 = vunpack.c.l.b16 %v716
      %v721 = vpack.c.b16 %v720, %v719
      %v724 = vunpack.c.l.b16 %v712
      %v725 = vunpack.c.l.b16 %v713
      %v726 = vpack.c.b16 %v725, %v724
      %v729 = vsel %vm371, %v721, 0
      %731 = vmatprep.subr.bf16.mxu0 0
      %732 = vmatpush1.bf16.msra.mxu0 0
      %733 = vmatprep.subr.bf16.mxu0 0
      %734 = vmatpush1.bf16.msra.mxu0 0
      %735 = vmatprep.subr.bf16.mxu0 0
      %736 = vmatpush1.bf16.msra.mxu0 0
      %737 = vmatprep.subr.bf16.mxu0 0
      %738 = vmatpush1.bf16.msra.mxu0 0
      %739 = vmatprep.subr.bf16.mxu0 0
      %740 = vmatpush1.bf16.msra.mxu0 0
      %741 = vmatprep.subr.bf16.mxu0 0
      %742 = vmatpush1.bf16.msra.mxu0 0
      %743 = vmatprep.subr.bf16.mxu0 0
      %744 = vmatpush1.bf16.msra.mxu0 0
      %745 = vmatprep.subr.bf16.mxu0 0
      %746 = vmatpush1.bf16.msra.mxu0 %v726
      %747 = vmatprep.subr.bf16.mxu0 0
      %748 = vmatpush2.bf16.msra.mxu0 0
      %749 = vmatprep.subr.bf16.mxu0 0
      %750 = vmatpush2.bf16.msra.mxu0 0
      %751 = vmatprep.subr.bf16.mxu0 0
      %752 = vmatpush2.bf16.msra.mxu0 0
      %753 = vmatprep.subr.bf16.mxu0 0
      %754 = vmatpush2.bf16.msra.mxu0 0
      %755 = vmatprep.subr.bf16.mxu0 0
      %756 = vmatpush2.bf16.msra.mxu0 0
      %757 = vmatprep.subr.bf16.mxu0 0
      %758 = vmatpush2.bf16.msra.mxu0 0
      %759 = vmatprep.subr.bf16.mxu0 0
      %760 = vmatpush2.bf16.msra.mxu0 0
      %761 = vmatprep.subr.bf16.mxu0 0
      %762 = vmatpush2.bf16.msra.mxu0 0
      %763 = vmatprep.mubr.bf16.mxu0 0
      %764 = vmatmul.mubr.bf16.gmra.mxu0 %v729
      %v765 = vpop.f32.mrf.mxu0
      %v766 = vadd.f32 0.0, %v765
      %v767 = vpop.f32.mrf.mxu0
      %v768 = vpop.f32.mrf.mxu0
      %v769 = vadd.f32 0.0, %v768
      %v770 = vpop.f32.mrf.mxu0
      %771 = vdwg.mxu0
      %v772 = vadd.f32 %v710, %v766
      %v773 = vadd.f32 %v711, %v769
      %s774 = scalar_lea.vmem %s3, 56
      %v775 = vld [vmem:[%s774] sm:$0xf]
      %v776 = vld [vmem:[%s774 + $0x4] sm:$0xf]
      %v779 = vunpack.c.l.b16 %v775
      %v780 = vunpack.c.l.b16 %v776
      %v781 = vpack.c.b16 %v780, %v779
      %v782 = vunpack.c.h.b16 %v712
      %v783 = vunpack.c.h.b16 %v713
      %v784 = vpack.c.b16 %v783, %v782
      %785 = vrot.lane.b32.xlu0 %v726, 127
      %v786 = vpop.permute.xlu0 %785
      %787 = vrot.lane.b32.xlu0 %v784, 127
      %v788 = vpop.permute.xlu0 %787
      %v789 = vsel %vm368, %v786, %v788
      %v792 = vsel %vm371, %v781, 0
      %794 = vmatprep.subr.bf16.mxu0 0
      %795 = vmatpush1.bf16.msra.mxu0 0
      %796 = vmatprep.subr.bf16.mxu0 0
      %797 = vmatpush1.bf16.msra.mxu0 0
      %798 = vmatprep.subr.bf16.mxu0 0
      %799 = vmatpush1.bf16.msra.mxu0 0
      %800 = vmatprep.subr.bf16.mxu0 0
      %801 = vmatpush1.bf16.msra.mxu0 0
      %802 = vmatprep.subr.bf16.mxu0 0
      %803 = vmatpush1.bf16.msra.mxu0 0
      %804 = vmatprep.subr.bf16.mxu0 0
      %805 = vmatpush1.bf16.msra.mxu0 0
      %806 = vmatprep.subr.bf16.mxu0 0
      %807 = vmatpush1.bf16.msra.mxu0 0
      %808 = vmatprep.subr.bf16.mxu0 0
      %809 = vmatpush1.bf16.msra.mxu0 %v789
      %810 = vmatprep.subr.bf16.mxu0 0
      %811 = vmatpush2.bf16.msra.mxu0 0
      %812 = vmatprep.subr.bf16.mxu0 0
      %813 = vmatpush2.bf16.msra.mxu0 0
      %814 = vmatprep.subr.bf16.mxu0 0
      %815 = vmatpush2.bf16.msra.mxu0 0
      %816 = vmatprep.subr.bf16.mxu0 0
      %817 = vmatpush2.bf16.msra.mxu0 0
      %818 = vmatprep.subr.bf16.mxu0 0
      %819 = vmatpush2.bf16.msra.mxu0 0
      %820 = vmatprep.subr.bf16.mxu0 0
      %821 = vmatpush2.bf16.msra.mxu0 0
      %822 = vmatprep.subr.bf16.mxu0 0
      %823 = vmatpush2.bf16.msra.mxu0 0
      %824 = vmatprep.subr.bf16.mxu0 0
      %825 = vmatpush2.bf16.msra.mxu0 0
      %826 = vmatprep.mubr.bf16.mxu0 0
      %827 = vmatmul.mubr.bf16.gmra.mxu0 %v792
      %v828 = vpop.f32.mrf.mxu0
      %v829 = vadd.f32 0.0, %v828
      %v830 = vpop.f32.mrf.mxu0
      %v831 = vpop.f32.mrf.mxu0
      %v832 = vadd.f32 0.0, %v831
      %v833 = vpop.f32.mrf.mxu0
      %834 = vdwg.mxu0
      %v835 = vadd.f32 %v772, %v829
      %v836 = vadd.f32 %v773, %v832
      %s837 = scalar_lea.vmem %s3, 64
      %v838 = vld [vmem:[%s837] sm:$0xf]
      %v839 = vld [vmem:[%s837 + $0x4] sm:$0xf]
      %v842 = vunpack.c.l.b16 %v838
      %v843 = vunpack.c.l.b16 %v839
      %v844 = vpack.c.b16 %v843, %v842
      %845 = vrot.lane.b32.xlu0 %v726, 126
      %v846 = vpop.permute.xlu0 %845
      %847 = vrot.lane.b32.xlu0 %v784, 126
      %v848 = vpop.permute.xlu0 %847
      %v849 = vsel %vm478, %v846, %v848
      %v852 = vsel %vm371, %v844, 0
      %854 = vmatprep.subr.bf16.mxu0 0
      %855 = vmatpush1.bf16.msra.mxu0 0
      %856 = vmatprep.subr.bf16.mxu0 0
      %857 = vmatpush1.bf16.msra.mxu0 0
      %858 = vmatprep.subr.bf16.mxu0 0
      %859 = vmatpush1.bf16.msra.mxu0 0
      %860 = vmatprep.subr.bf16.mxu0 0
      %861 = vmatpush1.bf16.msra.mxu0 0
      %862 = vmatprep.subr.bf16.mxu0 0
      %863 = vmatpush1.bf16.msra.mxu0 0
      %864 = vmatprep.subr.bf16.mxu0 0
      %865 = vmatpush1.bf16.msra.mxu0 0
      %866 = vmatprep.subr.bf16.mxu0 0
      %867 = vmatpush1.bf16.msra.mxu0 0
      %868 = vmatprep.subr.bf16.mxu0 0
      %869 = vmatpush1.bf16.msra.mxu0 %v849
      %870 = vmatprep.subr.bf16.mxu0 0
      %871 = vmatpush2.bf16.msra.mxu0 0
      %872 = vmatprep.subr.bf16.mxu0 0
      %873 = vmatpush2.bf16.msra.mxu0 0
      %874 = vmatprep.subr.bf16.mxu0 0
      %875 = vmatpush2.bf16.msra.mxu0 0
      %876 = vmatprep.subr.bf16.mxu0 0
      %877 = vmatpush2.bf16.msra.mxu0 0
      %878 = vmatprep.subr.bf16.mxu0 0
      %879 = vmatpush2.bf16.msra.mxu0 0
      %880 = vmatprep.subr.bf16.mxu0 0
      %881 = vmatpush2.bf16.msra.mxu0 0
      %882 = vmatprep.subr.bf16.mxu0 0
      %883 = vmatpush2.bf16.msra.mxu0 0
      %884 = vmatprep.subr.bf16.mxu0 0
      %885 = vmatpush2.bf16.msra.mxu0 0
      %886 = vmatprep.mubr.bf16.mxu0 0
      %887 = vmatmul.mubr.bf16.gmra.mxu0 %v852
      %v888 = vpop.f32.mrf.mxu0
      %v889 = vadd.f32 0.0, %v888
      %v890 = vpop.f32.mrf.mxu0
      %v891 = vpop.f32.mrf.mxu0
      %v892 = vadd.f32 0.0, %v891
      %v893 = vpop.f32.mrf.mxu0
      %894 = vdwg.mxu0
      %v895 = vadd.f32 %v835, %v889
      %v896 = vadd.f32 %v836, %v892
      %v897 = vld [vmem:[%s4] sm:$0xff]
      %v898 = vld [vmem:[%s4 + $0x8] sm:$0xff]
      %900 = vset.pattern.permute.xlu0 0
      %901 = vperm.xlu0 %900, %v897
      %v902 = vpop.permute.xlu0 %901
      %905 = vset.pattern.permute.xlu0 0
      %906 = vperm.xlu0 %905, %v898
      %v907 = vpop.permute.xlu0 %906
      %v909 = vadd.f32 %v895, %v902
      %v910 = vadd.f32 %v896, %v907
      %v911 = vpack.c.bf16 %v910, %v909
      %v913 = vunpack.c.l.b16 %v911
      %v914 = vunpack.c.h.b16 %v911
      %v915 = vpack.c.b16 %v913, %v913
      %v916 = vpack.c.b16 %v914, %v914
      %919 = vst [vmem:[%s342] sm:$0xf] %v915
      %920 = vst [vmem:[%s342 + $0x4] sm:$0xf] %v916
      %p921 = scmp.lt.s32.totalorder %s20, 1
      %s922 = scalar_select %p921, %s20, 1
      %p923 = scmp.lt.s32.totalorder %s21, 15
      %s924 = scalar_select %p923, %s21, 15
      %s925 = smul.addr %s924, 2
      %s926 = smul.addr %s922, 32
      %s927 = sadd.s32 %s925, %s926
      %s928 = smul.addr %s927, 4
      %s929 = scalar_lea.vmem %s5, %s928
      // Predicated region
      $region41: #{conv_ps_forward.1} parent=39 // pred_check
        %p930 = pneg %p178
      $region42: #{conv_ps_forward.1} parent=39 // pred_check_branch
        %932 = sbr.rel (%p930) target = $region44
      $region43: #{conv_ps_forward.1} parent=39 // pred_region
        _
      $region44: #{conv_ps_forward.1} parent=39 // pred_fallthru
        _
    $region40: #{conv_ps_forward.1} parent=5 // pred_fallthru
      _
    %p933 = scmp.le.s32.totalorder 2, %s11
    // Predicated region
    $region45: #{conv_ps_forward.1} parent=5 // pred_check
      %p934 = pneg %p933
    $region46: #{conv_ps_forward.1} parent=5 // pred_check_branch
      %936 = sbr.rel (%p934) target = $region48
    $region47: #{conv_ps_forward.1} parent=5 // pred_region
      %s937 = ssub.s32 %s11, 2
      // Predicated region
      $region49: #{conv_ps_forward.1} parent=47 // pred_check
        %p938 = pneg %p184
      $region50: #{conv_ps_forward.1} parent=47 // pred_check_branch
        %940 = sbr.rel (%p938) target = $region52
      $region51: #{conv_ps_forward.1} parent=47 // pred_region
        %p941 = scmp.lt.s32.totalorder %s22, 1
        %s942 = scalar_select %p941, %s22, 1
        %p943 = scmp.lt.s32.totalorder %s23, 15
        %s944 = scalar_select %p943, %s23, 15
        %s945 = smul.addr %s944, 2
        %s946 = smul.addr %s942, 32
        %s947 = sadd.s32 %s945, %s946
        %s948 = smul.addr %s947, 4
        %s949 = scalar_lea.vmem %s5, %s948
      $region52: #{conv_ps_forward.1} parent=47 // pred_fallthru
        _
    $region48: #{conv_ps_forward.1} parent=5 // pred_fallthru
      _
  $region6: #{conv_ps_forward.1} parent=0 // loop_footer
    %s15 = sadd.s32 1, %s11
  $region7: #{conv_ps_forward.1} parent=0 // loop_footer_branch
    %10 = sbr.rel target = $region3
  $region8: #{conv_ps_forward.1} parent=0 // loop_exit
    _

</llo_original>
